<compile_context>
chip_gen: v7x
topology: tpu7x:2x2x1
jax: 0.10.0
libtpu: 0.0.40
codegen_flags: <defaults>
</compile_context>

<pallas_src>
import jax
import jax.numpy as jnp
from jax.experimental import pallas as pl
from jax.experimental.pallas import tpu as pltpu

# ---- hyper-parameters (mirror the `pl` config module of the PyTorch code) ----
BERT_DIM      = 32     # pl.bert_dim
GNN_DIM       = 32     # pl.gnn_hidden_dim == pl.gnn_output_dim
DEP_EMBED_DIM = 16     # pl.dep_embed_dim
DEP_VOCAB     = 8      # dep_vocab_size
NUM_CLASSES   = 3      # classifier head width used in the demo
GNN_LAYERS    = 2      # pl.gnn_layer_num (two weight sets below)
MAX_TREE_DIS  = 4      # pl.max_tree_dis (integer-valued)
K_COEFF       = 1.0    # K passed to BERT_GNN
LN_EPS        = 1e-6


# ----------------------------- Pallas kernel ---------------------------------
def rdgnn_kernel(bert_ref, dep_idx_ref, dis_ref, asp_ref, soft_ref,
                 ln_a_ref, ln_b_ref,
                 w0_ref, b0_ref, w1_ref, b1_ref,
                 wt_ref, bt_ref, wc_ref, bc_ref,
                 out_ref):
    B, L, Db = bert_ref.shape
    V = DEP_VOCAB

    x = bert_ref[...]                                         # (B, L, Db) f32

    # --- LayerNorm (torch std() is unbiased; eps added to std, not var) ---
    mean = jnp.mean(x, axis=-1, keepdims=True)
    var = jnp.sum((x - mean) ** 2, axis=-1, keepdims=True) / (Db - 1)
    std = jnp.sqrt(var)
    h = ln_a_ref[...] * (x - mean) / (std + LN_EPS) + ln_b_ref[...]

    # --- DEP_IMP gather: soft[idx], zero where idx == 0 ---
    # softmax over the V dependency labels was hoisted to the wrapper; soft_ref
    # lives in SMEM, so this is an unrolled scalar-select chain (label 0 -> 0).
    idx = dep_idx_ref[...]                                    # (B, L, L) int32
    dep_att = jnp.zeros(idx.shape, jnp.float32)
    for v in range(1, V):
        dep_att = jnp.where(idx == v, soft_ref[v], dep_att)

    # --- dis_imp_function: (1 - (d/max)^max) * exp(-K d) ---
    dis = dis_ref[...]                                        # (B, L, L) f32
    ratio = dis * (1.0 / float(MAX_TREE_DIS))
    rpow = ratio
    for _ in range(MAX_TREE_DIS - 1):                         # pow by VPU multiplies
        rpow = rpow * ratio
    dis_att = (1.0 - rpow) * jnp.exp(-K_COEFF * dis)

    A = (dep_att + dis_att).astype(jnp.bfloat16)              # (B, L, L)

    # --- helpers: flat (B*L, Din) @ (Din, Dout) projection on the MXU ---
    def project(x3, w_ref, b_ref):
        x2 = x3.reshape(B * L, x3.shape[-1]).astype(jnp.bfloat16)
        y = jnp.dot(x2, w_ref[...].astype(jnp.bfloat16),
                    preferred_element_type=jnp.float32) + b_ref[...]
        return y.reshape(B, L, y.shape[-1])

    # --- 2 GCN layers: H <- relu(W(A @ H) + b) ---
    g = h
    for w_ref, b_ref in ((w0_ref, b0_ref), (w1_ref, b1_ref)):
        ah = jnp.einsum('bij,bjd->bid', A, g.astype(jnp.bfloat16),
                        preferred_element_type=jnp.float32)
        g = jnp.maximum(project(ah, w_ref, b_ref), 0.0)

    # --- transition + relu ---
    out = jnp.maximum(project(g, wt_ref, bt_ref), 0.0)        # (B, L, Dg)

    # --- aspect-masked mean pooling ---
    mask = asp_ref[...]                                       # (B, L, 1)
    asp_wn = jnp.sum(mask, axis=1)                            # (B, 1)
    pooled = jnp.sum(out * mask, axis=1) / asp_wn             # (B, Dg)
    # NOTE: matches PyTorch module — an all-zero aspect row would divide by 0.

    # --- classifier head (tiny, f32) ---
    logits = jnp.dot(pooled, wc_ref[...],
                     preferred_element_type=jnp.float32) + bc_ref[...]
    out_ref[...] = logits                                     # (B, C)


# ------------------------------- wrapper --------------------------------------
def rdgnn_forward(params, bert_output, syn_dep_adj, syn_dis_adj, aspect_mask):
    B, L, Db = bert_output.shape
    Dg = params["w0_t"].shape[1]
    C = params["wc_t"].shape[1]

    # Hoisted, batch-invariant DEP_IMP softmax over dependency labels (V values).
    query = params["dep_emb"] @ params["q_w"][0] + params["q_b"][0, 0]   # (V,)
    soft = jax.nn.softmax(query).astype(jnp.float32)                     # (V,)

    asp = aspect_mask.astype(jnp.float32)[:, :, None]                    # (B, L, 1)

    in_arrays = (
        bert_output, syn_dep_adj, syn_dis_adj.astype(jnp.float32), asp, soft,
        params["ln_a"], params["ln_b"],
        params["w0_t"], params["b0"], params["w1_t"], params["b1"],
        params["wt_t"], params["bt"], params["wc_t"], params["bc"],
    )

    vmem = lambda: pl.BlockSpec(memory_space=pltpu.MemorySpace.VMEM)
    smem = lambda: pl.BlockSpec(memory_space=pltpu.MemorySpace.SMEM)
    in_specs = [vmem(), vmem(), vmem(), vmem(), smem()] + [vmem()] * 10

    flops = 2 * B * (L * L * Db + L * Db * Dg          # GCN layer 0
                     + L * L * Dg + L * Dg * Dg        # GCN layer 1
                     + L * Dg * Dg                     # transition
                     + Dg * C)                         # classifier
    bytes_accessed = sum(int(a.size) * int(a.dtype.itemsize) for a in in_arrays)
    bytes_accessed += B * C * 4

    out = pl.pallas_call(
        rdgnn_kernel,
        out_shape=jax.ShapeDtypeStruct((B, C), jnp.float32),
        in_specs=in_specs,
        out_specs=pl.BlockSpec(memory_space=pltpu.MemorySpace.VMEM),
        cost_estimate=pl.CostEstimate(flops=flops,
                                      transcendentals=B * L * L,
                                      bytes_accessed=bytes_accessed),
    )(*in_arrays)
    return out


# --------------------------- pure-JAX reference --------------------------------
def rdgnn_reference(params, bert_output, syn_dep_adj, syn_dis_adj, aspect_mask):
    B, L, Db = bert_output.shape
    x = bert_output
    mean = x.mean(-1, keepdims=True)
    std = jnp.sqrt(jnp.sum((x - mean) ** 2, -1, keepdims=True) / (Db - 1))
    h = params["ln_a"][0] * (x - mean) / (std + LN_EPS) + params["ln_b"][0]

    query = params["dep_emb"] @ params["q_w"][0] + params["q_b"][0, 0]   # (V,)
    soft = jax.nn.softmax(query)
    dep_att = soft[syn_dep_adj]
    dep_att = jnp.where(syn_dep_adj == 0, 0.0, dep_att)

    ratio = syn_dis_adj / float(MAX_TREE_DIS)
    dis_att = (1.0 - ratio ** MAX_TREE_DIS) * jnp.exp(-K_COEFF * syn_dis_adj)
    # mirror the kernel's deliberate bf16 MXU-input quantization
    A = (dep_att + dis_att).astype(jnp.bfloat16)

    def proj(x3, w, b):
        y = jnp.dot(x3.reshape(B * L, x3.shape[-1]).astype(jnp.bfloat16),
                    w.astype(jnp.bfloat16),
                    preferred_element_type=jnp.float32) + b
        return y.reshape(B, L, -1)

    g = h
    for w, b in ((params["w0_t"], params["b0"]), (params["w1_t"], params["b1"])):
        ah = jnp.einsum('bij,bjd->bid', A, g.astype(jnp.bfloat16),
                        preferred_element_type=jnp.float32)
        g = jax.nn.relu(proj(ah, w, b))
    out = jax.nn.relu(proj(g, params["wt_t"], params["bt"]))

    m = aspect_mask.astype(jnp.float32)
    asp_wn = m.sum(1, keepdims=True)
    pooled = (out * m[:, :, None]).sum(1) / asp_wn
    return pooled @ params["wc_t"] + params["bc"]


# --------------------------------- main ----------------------------------------
def init_params(key):
    ks = jax.random.split(key, 12)
    n = lambda k, shape, s: (s * jax.random.normal(k, shape)).astype(jnp.float32)
    return {
        "dep_emb": n(ks[0], (DEP_VOCAB, DEP_EMBED_DIM), 1.0),
        "q_w":     n(ks[1], (1, DEP_EMBED_DIM), 0.3),
        "q_b":     n(ks[2], (1, 1), 0.1),
        "ln_a":    jnp.ones((1, BERT_DIM), jnp.float32),
        "ln_b":    jnp.zeros((1, BERT_DIM), jnp.float32),
        "w0_t":    n(ks[3], (BERT_DIM, GNN_DIM), BERT_DIM ** -0.5),
        "b0":      n(ks[4], (1, GNN_DIM), 0.05),
        "w1_t":    n(ks[5], (GNN_DIM, GNN_DIM), GNN_DIM ** -0.5),
        "b1":      n(ks[6], (1, GNN_DIM), 0.05),
        "wt_t":    n(ks[7], (GNN_DIM, GNN_DIM), GNN_DIM ** -0.5),
        "bt":      n(ks[8], (1, GNN_DIM), 0.05),
        "wc_t":    n(ks[9], (GNN_DIM, NUM_CLASSES), GNN_DIM ** -0.5),
        "bc":      n(ks[10], (1, NUM_CLASSES), 0.05),
    }


def bert_stub(word_emb, type_emb, bert_indices, bert_ids, bert_mask):
    # TODO(synk): the pretrained BERT encoder is an external module passed to
    # __init__; replaced with a deterministic embedding-sum stub producing
    # (B, L, bert_dim).
    out = word_emb[bert_indices] + type_emb[bert_ids]
    return out * bert_mask[..., None].astype(out.dtype)


if __name__ == "__main__":
    key = jax.random.PRNGKey(0)
    k_par, k_we, k_te, k_idx, k_ids, k_dep, k_dis = jax.random.split(key, 7)

    B, L = 2, 16
    VOCAB = 50

    params = init_params(k_par)
    word_emb = jax.random.normal(k_we, (VOCAB, BERT_DIM), jnp.float32)
    type_emb = jax.random.normal(k_te, (2, BERT_DIM), jnp.float32)

    # model inputs (same contract as the PyTorch forward's `input` list)
    bert_indices = jax.random.randint(k_idx, (B, L), 0, VOCAB, jnp.int32)
    bert_ids     = jax.random.randint(k_ids, (B, L), 0, 2, jnp.int32)
    bert_mask    = jnp.ones((B, L), jnp.float32)
    src_mask     = jnp.ones((B, L), jnp.float32)                 # only shapes are used
    aspect_mask  = ((jnp.arange(L) >= 2) & (jnp.arange(L) < 5)).astype(jnp.float32)
    aspect_mask  = jnp.broadcast_to(aspect_mask, (B, L))
    syn_dep_adj  = jax.random.randint(k_dep, (B, L, L), 0, DEP_VOCAB, jnp.int32)
    syn_dis_adj  = jax.random.randint(k_dis, (B, L, L), 0, MAX_TREE_DIS + 1,
                                      jnp.int32).astype(jnp.float32)

    # external BERT (stubbed) + dropout layers are identity in eval mode
    bert_output = bert_stub(word_emb, type_emb, bert_indices, bert_ids, bert_mask)

    result = rdgnn_forward(params, bert_output, syn_dep_adj, syn_dis_adj, aspect_mask)
    result = jax.block_until_ready(result)

    ref = rdgnn_reference(params, bert_output, syn_dep_adj, syn_dis_adj, aspect_mask)
    assert result.shape == (B, NUM_CLASSES)
    assert jnp.allclose(result, ref, rtol=2e-3, atol=2e-3), (result, ref)

    print("KERNEL_OK")
</pallas_src>

<mosaic_0001>
module attributes {stable_mosaic.version = 11 : i64} {
  func.func @rdgnn_kernel(%arg0: memref<2x16x32xf32, #tpu.memory_space<vmem>>, %arg1: memref<2x16x16xi32, #tpu.memory_space<vmem>>, %arg2: memref<2x16x16xf32, #tpu.memory_space<vmem>>, %arg3: memref<2x16x1xf32, #tpu.memory_space<vmem>>, %arg4: memref<8xf32, #tpu.memory_space<smem>>, %arg5: memref<1x32xf32, #tpu.memory_space<vmem>>, %arg6: memref<1x32xf32, #tpu.memory_space<vmem>>, %arg7: memref<32x32xf32, #tpu.memory_space<vmem>>, %arg8: memref<1x32xf32, #tpu.memory_space<vmem>>, %arg9: memref<32x32xf32, #tpu.memory_space<vmem>>, %arg10: memref<1x32xf32, #tpu.memory_space<vmem>>, %arg11: memref<32x32xf32, #tpu.memory_space<vmem>>, %arg12: memref<1x32xf32, #tpu.memory_space<vmem>>, %arg13: memref<32x3xf32, #tpu.memory_space<vmem>>, %arg14: memref<1x3xf32, #tpu.memory_space<vmem>>, %arg15: memref<2x3xf32, #tpu.memory_space<vmem>>) attributes {dimension_semantics = [], scalar_prefetch = 0 : i64, scratch_operands = 0 : i64, tpu.core_type = #tpu.core_type<tc>} {
    %c0 = arith.constant 0 : index
    %c0_0 = arith.constant 0 : index
    %c0_1 = arith.constant 0 : index
    %0 = vector.load %arg0[%c0, %c0_0, %c0_1] : memref<2x16x32xf32, #tpu.memory_space<vmem>>, vector<2x16x32xf32>
    %cst = arith.constant dense<0.000000e+00> : vector<2x16xf32>
    %1 = vector.multi_reduction <add>, %0, %cst [2] : vector<2x16x32xf32> to vector<2x16xf32>
    %2 = vector.shape_cast %1 : vector<2x16xf32> to vector<2x16x1xf32>
    %cst_2 = arith.constant 3.200000e+01 : f32
    %3 = vector.broadcast %cst_2 : f32 to vector<2x16x1xf32>
    %4 = arith.divf %2, %3 : vector<2x16x1xf32>
    %5 = vector.broadcast %4 : vector<2x16x1xf32> to vector<2x16x32xf32>
    %6 = arith.subf %0, %5 : vector<2x16x32xf32>
    %7 = arith.mulf %6, %6 : vector<2x16x32xf32>
    %cst_3 = arith.constant dense<0.000000e+00> : vector<2x16xf32>
    %8 = vector.multi_reduction <add>, %7, %cst_3 [2] : vector<2x16x32xf32> to vector<2x16xf32>
    %9 = vector.shape_cast %8 : vector<2x16xf32> to vector<2x16x1xf32>
    %cst_4 = arith.constant 3.100000e+01 : f32
    %10 = vector.broadcast %cst_4 : f32 to vector<2x16x1xf32>
    %11 = arith.divf %9, %10 : vector<2x16x1xf32>
    %12 = math.sqrt %11 : vector<2x16x1xf32>
    %c0_5 = arith.constant 0 : index
    %c0_6 = arith.constant 0 : index
    %13 = vector.load %arg5[%c0_5, %c0_6] : memref<1x32xf32, #tpu.memory_space<vmem>>, vector<1x32xf32>
    %14 = vector.broadcast %4 : vector<2x16x1xf32> to vector<2x16x32xf32>
    %15 = arith.subf %0, %14 : vector<2x16x32xf32>
    %16 = vector.shape_cast %13 : vector<1x32xf32> to vector<1x1x32xf32>
    %17 = vector.broadcast %16 : vector<1x1x32xf32> to vector<2x16x32xf32>
    %18 = arith.mulf %17, %15 : vector<2x16x32xf32>
    %cst_7 = arith.constant 9.99999997E-7 : f32
    %19 = vector.broadcast %cst_7 : f32 to vector<2x16x1xf32>
    %20 = arith.addf %12, %19 : vector<2x16x1xf32>
    %21 = vector.broadcast %20 : vector<2x16x1xf32> to vector<2x16x32xf32>
    %22 = arith.divf %18, %21 : vector<2x16x32xf32>
    %c0_8 = arith.constant 0 : index
    %c0_9 = arith.constant 0 : index
    %23 = vector.load %arg6[%c0_8, %c0_9] : memref<1x32xf32, #tpu.memory_space<vmem>>, vector<1x32xf32>
    %24 = vector.shape_cast %23 : vector<1x32xf32> to vector<1x1x32xf32>
    %25 = vector.broadcast %24 : vector<1x1x32xf32> to vector<2x16x32xf32>
    %26 = arith.addf %22, %25 : vector<2x16x32xf32>
    %c0_10 = arith.constant 0 : index
    %c0_11 = arith.constant 0 : index
    %c0_12 = arith.constant 0 : index
    %27 = vector.load %arg1[%c0_10, %c0_11, %c0_12] : memref<2x16x16xi32, #tpu.memory_space<vmem>>, vector<2x16x16xi32>
    %cst_13 = arith.constant 0.000000e+00 : f32
    %28 = vector.broadcast %cst_13 : f32 to vector<2x16x16xf32>
    %c1_i32 = arith.constant 1 : i32
    %29 = vector.broadcast %c1_i32 : i32 to vector<2x16x16xi32>
    %30 = arith.cmpi eq, %27, %29 : vector<2x16x16xi32>
    %c1 = arith.constant 1 : index
    %31 = memref.load %arg4[%c1] : memref<8xf32, #tpu.memory_space<smem>>
    %32 = vector.broadcast %31 : f32 to vector<2x16x16xf32>
    %33 = arith.select %30, %32, %28 : vector<2x16x16xi1>, vector<2x16x16xf32>
    %c2_i32 = arith.constant 2 : i32
    %34 = vector.broadcast %c2_i32 : i32 to vector<2x16x16xi32>
    %35 = arith.cmpi eq, %27, %34 : vector<2x16x16xi32>
    %c2 = arith.constant 2 : index
    %36 = memref.load %arg4[%c2] : memref<8xf32, #tpu.memory_space<smem>>
    %37 = vector.broadcast %36 : f32 to vector<2x16x16xf32>
    %38 = arith.select %35, %37, %33 : vector<2x16x16xi1>, vector<2x16x16xf32>
    %c3_i32 = arith.constant 3 : i32
    %39 = vector.broadcast %c3_i32 : i32 to vector<2x16x16xi32>
    %40 = arith.cmpi eq, %27, %39 : vector<2x16x16xi32>
    %c3 = arith.constant 3 : index
    %41 = memref.load %arg4[%c3] : memref<8xf32, #tpu.memory_space<smem>>
    %42 = vector.broadcast %41 : f32 to vector<2x16x16xf32>
    %43 = arith.select %40, %42, %38 : vector<2x16x16xi1>, vector<2x16x16xf32>
    %c4_i32 = arith.constant 4 : i32
    %44 = vector.broadcast %c4_i32 : i32 to vector<2x16x16xi32>
    %45 = arith.cmpi eq, %27, %44 : vector<2x16x16xi32>
    %c4 = arith.constant 4 : index
    %46 = memref.load %arg4[%c4] : memref<8xf32, #tpu.memory_space<smem>>
    %47 = vector.broadcast %46 : f32 to vector<2x16x16xf32>
    %48 = arith.select %45, %47, %43 : vector<2x16x16xi1>, vector<2x16x16xf32>
    %c5_i32 = arith.constant 5 : i32
    %49 = vector.broadcast %c5_i32 : i32 to vector<2x16x16xi32>
    %50 = arith.cmpi eq, %27, %49 : vector<2x16x16xi32>
    %c5 = arith.constant 5 : index
    %51 = memref.load %arg4[%c5] : memref<8xf32, #tpu.memory_space<smem>>
    %52 = vector.broadcast %51 : f32 to vector<2x16x16xf32>
    %53 = arith.select %50, %52, %48 : vector<2x16x16xi1>, vector<2x16x16xf32>
    %c6_i32 = arith.constant 6 : i32
    %54 = vector.broadcast %c6_i32 : i32 to vector<2x16x16xi32>
    %55 = arith.cmpi eq, %27, %54 : vector<2x16x16xi32>
    %c6 = arith.constant 6 : index
    %56 = memref.load %arg4[%c6] : memref<8xf32, #tpu.memory_space<smem>>
    %57 = vector.broadcast %56 : f32 to vector<2x16x16xf32>
    %58 = arith.select %55, %57, %53 : vector<2x16x16xi1>, vector<2x16x16xf32>
    %c7_i32 = arith.constant 7 : i32
    %59 = vector.broadcast %c7_i32 : i32 to vector<2x16x16xi32>
    %60 = arith.cmpi eq, %27, %59 : vector<2x16x16xi32>
    %c7 = arith.constant 7 : index
    %61 = memref.load %arg4[%c7] : memref<8xf32, #tpu.memory_space<smem>>
    %62 = vector.broadcast %61 : f32 to vector<2x16x16xf32>
    %63 = arith.select %60, %62, %58 : vector<2x16x16xi1>, vector<2x16x16xf32>
    %c0_14 = arith.constant 0 : index
    %c0_15 = arith.constant 0 : index
    %c0_16 = arith.constant 0 : index
    %64 = vector.load %arg2[%c0_14, %c0_15, %c0_16] : memref<2x16x16xf32, #tpu.memory_space<vmem>>, vector<2x16x16xf32>
    %cst_17 = arith.constant 2.500000e-01 : f32
    %65 = vector.broadcast %cst_17 : f32 to vector<2x16x16xf32>
    %66 = arith.mulf %64, %65 : vector<2x16x16xf32>
    %67 = arith.mulf %66, %66 : vector<2x16x16xf32>
    %68 = arith.mulf %67, %66 : vector<2x16x16xf32>
    %69 = arith.mulf %68, %66 : vector<2x16x16xf32>
    %cst_18 = arith.constant 1.000000e+00 : f32
    %70 = vector.broadcast %cst_18 : f32 to vector<2x16x16xf32>
    %71 = arith.subf %70, %69 : vector<2x16x16xf32>
    %cst_19 = arith.constant -1.000000e+00 : f32
    %72 = vector.broadcast %cst_19 : f32 to vector<2x16x16xf32>
    %73 = arith.mulf %72, %64 : vector<2x16x16xf32>
    %74 = math.exp %73 : vector<2x16x16xf32>
    %75 = arith.mulf %71, %74 : vector<2x16x16xf32>
    %76 = arith.addf %63, %75 : vector<2x16x16xf32>
    %77 = arith.truncf %76 : vector<2x16x16xf32> to vector<2x16x16xbf16>
    %78 = arith.truncf %26 : vector<2x16x32xf32> to vector<2x16x32xbf16>
    "tpu.trace_start"() <{level = 10 : i32, message = "bij,bjd->bid"}> : () -> ()
    %cst_20 = arith.constant dense<0.000000e+00> : vector<2x16x32xf32>
    %79 = tpu.matmul %77, %78, %cst_20 {dimension_numbers = #tpu.dot_dimension_numbers<[2], [1], [1], [2], [0, 0, 0, 1, 1, 2], [0], [0]>} : vector<2x16x16xbf16>, vector<2x16x32xbf16>, vector<2x16x32xf32> -> vector<2x16x32xf32>
    "tpu.trace_stop"() : () -> ()
    %80 = vector.shape_cast %79 : vector<2x16x32xf32> to vector<32x32xf32>
    %81 = arith.truncf %80 : vector<32x32xf32> to vector<32x32xbf16>
    %c0_21 = arith.constant 0 : index
    %c0_22 = arith.constant 0 : index
    %82 = vector.load %arg7[%c0_21, %c0_22] : memref<32x32xf32, #tpu.memory_space<vmem>>, vector<32x32xf32>
    %83 = arith.truncf %82 : vector<32x32xf32> to vector<32x32xbf16>
    %cst_23 = arith.constant dense<0.000000e+00> : vector<32x32xf32>
    %84 = tpu.matmul %81, %83, %cst_23 {dimension_numbers = #tpu.dot_dimension_numbers<[1], [0], [0], [1], [0, 0, 1, 1], [], []>} : vector<32x32xbf16>, vector<32x32xbf16>, vector<32x32xf32> -> vector<32x32xf32>
    %c0_24 = arith.constant 0 : index
    %c0_25 = arith.constant 0 : index
    %85 = vector.load %arg8[%c0_24, %c0_25] : memref<1x32xf32, #tpu.memory_space<vmem>>, vector<1x32xf32>
    %86 = vector.broadcast %85 : vector<1x32xf32> to vector<32x32xf32>
    %87 = arith.addf %84, %86 : vector<32x32xf32>
    %88 = vector.shape_cast %87 : vector<32x32xf32> to vector<2x16x32xf32>
    %cst_26 = arith.constant 0.000000e+00 : f32
    %89 = vector.broadcast %cst_26 : f32 to vector<2x16x32xf32>
    %90 = arith.maximumf %88, %89 : vector<2x16x32xf32>
    %91 = arith.truncf %90 : vector<2x16x32xf32> to vector<2x16x32xbf16>
    "tpu.trace_start"() <{level = 10 : i32, message = "bij,bjd->bid"}> : () -> ()
    %cst_27 = arith.constant dense<0.000000e+00> : vector<2x16x32xf32>
    %92 = tpu.matmul %77, %91, %cst_27 {dimension_numbers = #tpu.dot_dimension_numbers<[2], [1], [1], [2], [0, 0, 0, 1, 1, 2], [0], [0]>} : vector<2x16x16xbf16>, vector<2x16x32xbf16>, vector<2x16x32xf32> -> vector<2x16x32xf32>
    "tpu.trace_stop"() : () -> ()
    %93 = vector.shape_cast %92 : vector<2x16x32xf32> to vector<32x32xf32>
    %94 = arith.truncf %93 : vector<32x32xf32> to vector<32x32xbf16>
    %c0_28 = arith.constant 0 : index
    %c0_29 = arith.constant 0 : index
    %95 = vector.load %arg9[%c0_28, %c0_29] : memref<32x32xf32, #tpu.memory_space<vmem>>, vector<32x32xf32>
    %96 = arith.truncf %95 : vector<32x32xf32> to vector<32x32xbf16>
    %cst_30 = arith.constant dense<0.000000e+00> : vector<32x32xf32>
    %97 = tpu.matmul %94, %96, %cst_30 {dimension_numbers = #tpu.dot_dimension_numbers<[1], [0], [0], [1], [0, 0, 1, 1], [], []>} : vector<32x32xbf16>, vector<32x32xbf16>, vector<32x32xf32> -> vector<32x32xf32>
    %c0_31 = arith.constant 0 : index
    %c0_32 = arith.constant 0 : index
    %98 = vector.load %arg10[%c0_31, %c0_32] : memref<1x32xf32, #tpu.memory_space<vmem>>, vector<1x32xf32>
    %99 = vector.broadcast %98 : vector<1x32xf32> to vector<32x32xf32>
    %100 = arith.addf %97, %99 : vector<32x32xf32>
    %101 = vector.shape_cast %100 : vector<32x32xf32> to vector<2x16x32xf32>
    %cst_33 = arith.constant 0.000000e+00 : f32
    %102 = vector.broadcast %cst_33 : f32 to vector<2x16x32xf32>
    %103 = arith.maximumf %101, %102 : vector<2x16x32xf32>
    %104 = vector.shape_cast %103 : vector<2x16x32xf32> to vector<32x32xf32>
    %105 = arith.truncf %104 : vector<32x32xf32> to vector<32x32xbf16>
    %c0_34 = arith.constant 0 : index
    %c0_35 = arith.constant 0 : index
    %106 = vector.load %arg11[%c0_34, %c0_35] : memref<32x32xf32, #tpu.memory_space<vmem>>, vector<32x32xf32>
    %107 = arith.truncf %106 : vector<32x32xf32> to vector<32x32xbf16>
    %cst_36 = arith.constant dense<0.000000e+00> : vector<32x32xf32>
    %108 = tpu.matmul %105, %107, %cst_36 {dimension_numbers = #tpu.dot_dimension_numbers<[1], [0], [0], [1], [0, 0, 1, 1], [], []>} : vector<32x32xbf16>, vector<32x32xbf16>, vector<32x32xf32> -> vector<32x32xf32>
    %c0_37 = arith.constant 0 : index
    %c0_38 = arith.constant 0 : index
    %109 = vector.load %arg12[%c0_37, %c0_38] : memref<1x32xf32, #tpu.memory_space<vmem>>, vector<1x32xf32>
    %110 = vector.broadcast %109 : vector<1x32xf32> to vector<32x32xf32>
    %111 = arith.addf %108, %110 : vector<32x32xf32>
    %112 = vector.shape_cast %111 : vector<32x32xf32> to vector<2x16x32xf32>
    %cst_39 = arith.constant 0.000000e+00 : f32
    %113 = vector.broadcast %cst_39 : f32 to vector<2x16x32xf32>
    %114 = arith.maximumf %112, %113 : vector<2x16x32xf32>
    %c0_40 = arith.constant 0 : index
    %c0_41 = arith.constant 0 : index
    %c0_42 = arith.constant 0 : index
    %115 = vector.load %arg3[%c0_40, %c0_41, %c0_42] : memref<2x16x1xf32, #tpu.memory_space<vmem>>, vector<2x16x1xf32>
    %cst_43 = arith.constant dense<0.000000e+00> : vector<2x1xf32>
    %116 = vector.multi_reduction <add>, %115, %cst_43 [1] : vector<2x16x1xf32> to vector<2x1xf32>
    %117 = vector.broadcast %115 : vector<2x16x1xf32> to vector<2x16x32xf32>
    %118 = arith.mulf %114, %117 : vector<2x16x32xf32>
    %cst_44 = arith.constant dense<0.000000e+00> : vector<2x32xf32>
    %119 = vector.multi_reduction <add>, %118, %cst_44 [1] : vector<2x16x32xf32> to vector<2x32xf32>
    %120 = vector.broadcast %116 : vector<2x1xf32> to vector<2x32xf32>
    %121 = arith.divf %119, %120 : vector<2x32xf32>
    %c0_45 = arith.constant 0 : index
    %c0_46 = arith.constant 0 : index
    %122 = vector.load %arg13[%c0_45, %c0_46] : memref<32x3xf32, #tpu.memory_space<vmem>>, vector<32x3xf32>
    %cst_47 = arith.constant dense<0.000000e+00> : vector<2x3xf32>
    %123 = tpu.matmul %121, %122, %cst_47 {dimension_numbers = #tpu.dot_dimension_numbers<[1], [0], [0], [1], [0, 0, 1, 1], [], []>} : vector<2x32xf32>, vector<32x3xf32>, vector<2x3xf32> -> vector<2x3xf32>
    %c0_48 = arith.constant 0 : index
    %c0_49 = arith.constant 0 : index
    %124 = vector.load %arg14[%c0_48, %c0_49] : memref<1x3xf32, #tpu.memory_space<vmem>>, vector<1x3xf32>
    %125 = vector.broadcast %124 : vector<1x3xf32> to vector<2x3xf32>
    %126 = arith.addf %123, %125 : vector<2x3xf32>
    %c0_50 = arith.constant 0 : index
    %c0_51 = arith.constant 0 : index
    %127 = vector.load %arg15[%c0_50, %c0_51] : memref<2x3xf32, #tpu.memory_space<vmem>>, vector<2x3xf32>
    tpu.vector_store %arg15[%c0_50, %c0_51], %126 {strides = array<i32>} : memref<2x3xf32, #tpu.memory_space<vmem>>, vector<2x3xf32>,
    return
  }
}

</mosaic_0001>

<llo_original>
// kernel: tpu_custom_call.1
$region0: #{tpu_custom_call.1}
  #allocation0 [shape = 'u32[]', space=smem, size = 0x4, offset = 0x4, fixed_abs, tag = 'smem constant byte address 0x4 - core index']
  #allocation1 [shape = 'u32[144,128]{1,0:T(1,128)}', space=vmem, size = 0x12000, scoped, tag = 'internal scratch']
  %s0 = inlined_call_operand.vmem [shape: f32[2,16,32], index: 0, kind: input, shape index: {}]
  %s1 = inlined_call_operand.vmem [shape: s32[2,16,16], index: 1, kind: input, shape index: {}]
  %s2 = inlined_call_operand.hbm [shape: f32[2,16,16], index: 2, kind: input, shape index: {}]
  %s3 = inlined_call_operand.vmem [shape: f32[2,16,1], index: 3, kind: input, shape index: {}]
  %s4 = inlined_call_operand.hbm [shape: f32[8], index: 4, kind: input, shape index: {}]
  %s5 = inlined_call_operand.hbm [shape: f32[1,32], index: 5, kind: input, shape index: {}]
  %s6 = inlined_call_operand.hbm [shape: f32[1,32], index: 6, kind: input, shape index: {}]
  %s7 = inlined_call_operand.vmem [shape: f32[32,32], index: 7, kind: input, shape index: {}]
  %s8 = inlined_call_operand.hbm [shape: f32[1,32], index: 8, kind: input, shape index: {}]
  %s9 = inlined_call_operand.hbm [shape: f32[32,32], index: 9, kind: input, shape index: {}]
  %s10 = inlined_call_operand.vmem [shape: f32[1,32], index: 10, kind: input, shape index: {}]
  %s11 = inlined_call_operand.hbm [shape: f32[32,32], index: 11, kind: input, shape index: {}]
  %s12 = inlined_call_operand.vmem [shape: f32[1,32], index: 12, kind: input, shape index: {}]
  %s13 = inlined_call_operand.vmem [shape: f32[32,3], index: 13, kind: input, shape index: {}]
  %s14 = inlined_call_operand.vmem [shape: f32[1,3], index: 14, kind: input, shape index: {}]
  %s15 = inlined_call_operand.hbm [shape: f32[2,3], index: 15, kind: output, shape index: {}]
  %s16 = sld [smem:[#allocation0]]
  $region98: #{tpu_custom_call.1} parent=0
    _
  %s18 = ssub.s32 1, %s16
  %s19 = scalar_select 0, %s18, %s16
  $region1: #{tpu_custom_call.1} parent=0
    #allocation2 [shape = 'u8[16384]{0}', space=vmem, size = 0x4000, scoped, tag = 'input window, operand 2, single buffered']
    #allocation3 [shape = 's32[1]{0}', space=sflag, size = 0x4, scoped, tag = 'scoped memory for tpu_custom_call.1']
    #allocation4 [shape = 's32[1]{0}', space=sflag, size = 0x4, scoped, tag = 'scoped memory for tpu_custom_call.1']
    #allocation5 [shape = 's32[1]{0}', space=sflag, size = 0x4, scoped, tag = 'scoped memory for tpu_custom_call.1']
    #allocation6 [shape = 'u8[512]{0}', space=smem, size = 0x200, scoped, tag = 'input window, operand 4, single buffered']
    #allocation7 [shape = 'u8[512]{0}', space=vmem, size = 0x400, scoped, tag = 'input window, operand 5, single buffered']
    #allocation8 [shape = 's32[1]{0}', space=sflag, size = 0x4, scoped, tag = 'scoped memory for tpu_custom_call.1']
    #allocation9 [shape = 'u8[512]{0}', space=vmem, size = 0x400, scoped, tag = 'input window, operand 6, single buffered']
    #allocation10 [shape = 'u8[512]{0}', space=vmem, size = 0x400, scoped, tag = 'input window, operand 8, single buffered']
    #allocation11 [shape = 's32[1]{0}', space=sflag, size = 0x4, scoped, tag = 'scoped memory for tpu_custom_call.1']
    #allocation12 [shape = 'u8[16384]{0}', space=vmem, size = 0x4000, scoped, tag = 'input window, operand 9, single buffered']
    #allocation13 [shape = 'u8[16384]{0}', space=vmem, size = 0x4000, scoped, tag = 'input window, operand 11, single buffered']
    #allocation14 [shape = 's32[1]{0}', space=sflag, size = 0x4, scoped, tag = 'scoped memory for tpu_custom_call.1']
    #allocation15 [shape = 'u8[1024]{0}', space=vmem, size = 0x400, scoped, tag = 'output window, operand 0, single buffered']
    %20 = vsyncpa [#allocation3], 0
    %21 = vsyncpa [#allocation5], 0
    %22 = vsyncpa [#allocation8], 0
    %23 = vsyncpa [#allocation11], 0
    %24 = vsyncpa [#allocation14], 0
    %25 = vsyncpa [#allocation4], 0
    // Predicated region
    $region2: #{tpu_custom_call.1} parent=1 // pred_check
      _
    $region3: #{tpu_custom_call.1} parent=1 // pred_check_branch
      %27 = sbr.rel (0) target = $region5
    $region4: #{tpu_custom_call.1} parent=1 // pred_region
      _
    $region5: #{tpu_custom_call.1} parent=1 // pred_fallthru
      _
    // Predicated region
    $region6: #{tpu_custom_call.1} parent=1 // pred_check
      _
    $region7: #{tpu_custom_call.1} parent=1 // pred_check_branch
      %29 = sbr.rel (0) target = $region9
    $region8: #{tpu_custom_call.1} parent=1 // pred_region
      _
    $region9: #{tpu_custom_call.1} parent=1 // pred_fallthru
      _
    // Predicated region
    $region10: #{tpu_custom_call.1} parent=1 // pred_check
      _
    $region11: #{tpu_custom_call.1} parent=1 // pred_check_branch
      %31 = sbr.rel (0) target = $region13
    $region12: #{tpu_custom_call.1} parent=1 // pred_region
      %s33 = ssub.s32 512, 512
      %34 = vsyncadd [#allocation3], %s33
      %s35 = sshll.u32 [#allocation2], 4
      %s36 = int_to_ptr.vmem [resolvable:$true] %s35
      %41 = dma.hbm_to_vmem [thread:$0]  %s2, 512, %s36, [#allocation3], 128, 128, 8
    $region13: #{tpu_custom_call.1} parent=1 // pred_fallthru
      _
    // Predicated region
    $region14: #{tpu_custom_call.1} parent=1 // pred_check
      _
    $region15: #{tpu_custom_call.1} parent=1 // pred_check_branch
      %43 = sbr.rel (0) target = $region17
    $region16: #{tpu_custom_call.1} parent=1 // pred_region
      _
    $region17: #{tpu_custom_call.1} parent=1 // pred_fallthru
      _
    // Predicated region
    $region18: #{tpu_custom_call.1} parent=1 // pred_check
      _
    $region19: #{tpu_custom_call.1} parent=1 // pred_check_branch
      %45 = sbr.rel (0) target = $region21
    $region20: #{tpu_custom_call.1} parent=1 // pred_region
      %s47 = ssub.s32 16, 16
      %48 = vsyncadd [#allocation5], %s47
      %51 = dma.hbm_to_smem %s4, 16, [#allocation6], [#allocation5]
    $region21: #{tpu_custom_call.1} parent=1 // pred_fallthru
      _
    // Predicated region
    $region22: #{tpu_custom_call.1} parent=1 // pred_check
      _
    $region23: #{tpu_custom_call.1} parent=1 // pred_check_branch
      %53 = sbr.rel (0) target = $region25
    $region24: #{tpu_custom_call.1} parent=1 // pred_region
      %s55 = ssub.s32 16, 16
      %56 = vsyncadd [#allocation8], %s55
      %s58 = sshll.u32 [#allocation7], 4
      %s59 = int_to_ptr.vmem [resolvable:$true] %s58
      %61 = dma.hbm_to_vmem [thread:$0]  %s5, 16, %s59, [#allocation8]
    $region25: #{tpu_custom_call.1} parent=1 // pred_fallthru
      _
    // Predicated region
    $region26: #{tpu_custom_call.1} parent=1 // pred_check
      _
    $region27: #{tpu_custom_call.1} parent=1 // pred_check_branch
      %63 = sbr.rel (0) target = $region29
    $region28: #{tpu_custom_call.1} parent=1 // pred_region
      %s65 = ssub.s32 16, 16
      %66 = vsyncadd [#allocation8], %s65
      %s68 = sshll.u32 [#allocation9], 4
      %s69 = int_to_ptr.vmem [resolvable:$true] %s68
      %71 = dma.hbm_to_vmem [thread:$0]  %s6, 16, %s69, [#allocation8]
    $region29: #{tpu_custom_call.1} parent=1 // pred_fallthru
      _
    // Predicated region
    $region30: #{tpu_custom_call.1} parent=1 // pred_check
      _
    $region31: #{tpu_custom_call.1} parent=1 // pred_check_branch
      %73 = sbr.rel (0) target = $region33
    $region32: #{tpu_custom_call.1} parent=1 // pred_region
      _
    $region33: #{tpu_custom_call.1} parent=1 // pred_fallthru
      _
    // Predicated region
    $region34: #{tpu_custom_call.1} parent=1 // pred_check
      _
    $region35: #{tpu_custom_call.1} parent=1 // pred_check_branch
      %75 = sbr.rel (0) target = $region37
    $region36: #{tpu_custom_call.1} parent=1 // pred_region
      %s77 = ssub.s32 16, 16
      %78 = vsyncadd [#allocation11], %s77
      %s80 = sshll.u32 [#allocation10], 4
      %s81 = int_to_ptr.vmem [resolvable:$true] %s80
      %83 = dma.hbm_to_vmem [thread:$0]  %s8, 16, %s81, [#allocation11]
    $region37: #{tpu_custom_call.1} parent=1 // pred_fallthru
      _
    // Predicated region
    $region38: #{tpu_custom_call.1} parent=1 // pred_check
      _
    $region39: #{tpu_custom_call.1} parent=1 // pred_check_branch
      %85 = sbr.rel (0) target = $region41
    $region40: #{tpu_custom_call.1} parent=1 // pred_region
      %s87 = ssub.s32 512, 512
      %88 = vsyncadd [#allocation11], %s87
      %s89 = sshll.u32 [#allocation12], 4
      %s90 = int_to_ptr.vmem [resolvable:$true] %s89
      %95 = dma.hbm_to_vmem [thread:$0]  %s9, 512, %s90, [#allocation11], 128, 128, 8
    $region41: #{tpu_custom_call.1} parent=1 // pred_fallthru
      _
    // Predicated region
    $region42: #{tpu_custom_call.1} parent=1 // pred_check
      _
    $region43: #{tpu_custom_call.1} parent=1 // pred_check_branch
      %97 = sbr.rel (0) target = $region45
    $region44: #{tpu_custom_call.1} parent=1 // pred_region
      _
    $region45: #{tpu_custom_call.1} parent=1 // pred_fallthru
      _
    // Predicated region
    $region46: #{tpu_custom_call.1} parent=1 // pred_check
      _
    $region47: #{tpu_custom_call.1} parent=1 // pred_check_branch
      %99 = sbr.rel (0) target = $region49
    $region48: #{tpu_custom_call.1} parent=1 // pred_region
      %s101 = ssub.s32 512, 512
      %102 = vsyncadd [#allocation14], %s101
      %s103 = sshll.u32 [#allocation13], 4
      %s104 = int_to_ptr.vmem [resolvable:$true] %s103
      %109 = dma.hbm_to_vmem [thread:$0]  %s11, 512, %s104, [#allocation14], 128, 128, 8
    $region49: #{tpu_custom_call.1} parent=1 // pred_fallthru
      _
    // Predicated region
    $region50: #{tpu_custom_call.1} parent=1 // pred_check
      _
    $region51: #{tpu_custom_call.1} parent=1 // pred_check_branch
      %111 = sbr.rel (0) target = $region53
    $region52: #{tpu_custom_call.1} parent=1 // pred_region
      _
    $region53: #{tpu_custom_call.1} parent=1 // pred_fallthru
      _
    // Predicated region
    $region54: #{tpu_custom_call.1} parent=1 // pred_check
      _
    $region55: #{tpu_custom_call.1} parent=1 // pred_check_branch
      %113 = sbr.rel (0) target = $region57
    $region56: #{tpu_custom_call.1} parent=1 // pred_region
      _
    $region57: #{tpu_custom_call.1} parent=1 // pred_fallthru
      _
    // Predicated region
    $region58: #{tpu_custom_call.1} parent=1 // pred_check
      _
    $region59: #{tpu_custom_call.1} parent=1 // pred_check_branch
      %115 = sbr.rel (0) target = $region61
    $region60: #{tpu_custom_call.1} parent=1 // pred_region
      _
    $region61: #{tpu_custom_call.1} parent=1 // pred_fallthru
      _
    // Predicated region
    $region62: #{tpu_custom_call.1} parent=1 // pred_check
      _
    $region63: #{tpu_custom_call.1} parent=1 // pred_check_branch
      %117 = sbr.rel (0) target = $region65
    $region64: #{tpu_custom_call.1} parent=1 // pred_region
      %118 = dma.done [#allocation3], 512
    $region65: #{tpu_custom_call.1} parent=1 // pred_fallthru
      _
    // Predicated region
    $region66: #{tpu_custom_call.1} parent=1 // pred_check
      _
    $region67: #{tpu_custom_call.1} parent=1 // pred_check_branch
      %120 = sbr.rel (0) target = $region69
    $region68: #{tpu_custom_call.1} parent=1 // pred_region
      %121 = dma.done [#allocation5], 16
    $region69: #{tpu_custom_call.1} parent=1 // pred_fallthru
      _
    // Predicated region
    $region70: #{tpu_custom_call.1} parent=1 // pred_check
      _
    $region71: #{tpu_custom_call.1} parent=1 // pred_check_branch
      %123 = sbr.rel (0) target = $region73
    $region72: #{tpu_custom_call.1} parent=1 // pred_region
      %124 = dma.done [#allocation8], 16
    $region73: #{tpu_custom_call.1} parent=1 // pred_fallthru
      _
    // Predicated region
    $region74: #{tpu_custom_call.1} parent=1 // pred_check
      _
    $region75: #{tpu_custom_call.1} parent=1 // pred_check_branch
      %126 = sbr.rel (0) target = $region77
    $region76: #{tpu_custom_call.1} parent=1 // pred_region
      %127 = dma.done [#allocation8], 16
    $region77: #{tpu_custom_call.1} parent=1 // pred_fallthru
      _
    // Predicated region
    $region78: #{tpu_custom_call.1} parent=1 // pred_check
      _
    $region79: #{tpu_custom_call.1} parent=1 // pred_check_branch
      %129 = sbr.rel (0) target = $region81
    $region80: #{tpu_custom_call.1} parent=1 // pred_region
      %130 = dma.done [#allocation11], 16
    $region81: #{tpu_custom_call.1} parent=1 // pred_fallthru
      _
    // Predicated region
    $region82: #{tpu_custom_call.1} parent=1 // pred_check
      _
    $region83: #{tpu_custom_call.1} parent=1 // pred_check_branch
      %132 = sbr.rel (0) target = $region85
    $region84: #{tpu_custom_call.1} parent=1 // pred_region
      %133 = dma.done [#allocation11], 512
    $region85: #{tpu_custom_call.1} parent=1 // pred_fallthru
      _
    // Predicated region
    $region86: #{tpu_custom_call.1} parent=1 // pred_check
      _
    $region87: #{tpu_custom_call.1} parent=1 // pred_check_branch
      %135 = sbr.rel (0) target = $region89
    $region88: #{tpu_custom_call.1} parent=1 // pred_region
      %136 = dma.done [#allocation14], 512
    $region89: #{tpu_custom_call.1} parent=1 // pred_fallthru
      _
    %137 = sfence
    %v139 = vld [vmem:[%s0] sm:$0xff]
    %v140 = vld [vmem:[%s0 + $0x8] sm:$0xff]
    %v141 = vld [vmem:[%s0 + $0x10] sm:$0xff]
    %v142 = vld [vmem:[%s0 + $0x18] sm:$0xff]
    %vm143 = vcmask 261120
    %v144 = vsel %vm143, %v139, 0.0
    %145 = vadd.xlane.f32.xlu0 %v144
    %v146 = vpop.xlane.xlu0 %145
    %v147 = vsel %vm143, %v140, 0.0
    %148 = vadd.xlane.f32.xlu0 %v147
    %v149 = vpop.xlane.xlu0 %148
    %v150 = vsel %vm143, %v141, 0.0
    %151 = vadd.xlane.f32.xlu0 %v150
    %v152 = vpop.xlane.xlu0 %151
    %v153 = vsel %vm143, %v142, 0.0
    %154 = vadd.xlane.f32.xlu0 %v153
    %v155 = vpop.xlane.xlu0 %154
    %v156 = vrcp.pop 32.0
    %v157 = vmul.f32 %v146, %v156
    %v158 = vmul.f32 %v149, %v156
    %v159 = vmul.f32 %v152, %v156
    %v160 = vmul.f32 %v155, %v156
    %v161 = vsub.f32 %v139, %v157
    %v162 = vsub.f32 %v140, %v158
    %v163 = vsub.f32 %v141, %v159
    %v164 = vsub.f32 %v142, %v160
    %v165 = vmul.f32 %v161, %v161
    %v166 = vmul.f32 %v162, %v162
    %v167 = vmul.f32 %v163, %v163
    %v168 = vmul.f32 %v164, %v164
    %v169 = vsel %vm143, %v165, 0.0
    %170 = vadd.xlane.f32.xlu0 %v169
    %v171 = vpop.xlane.xlu0 %170
    %v172 = vsel %vm143, %v166, 0.0
    %173 = vadd.xlane.f32.xlu0 %v172
    %v174 = vpop.xlane.xlu0 %173
    %v175 = vsel %vm143, %v167, 0.0
    %176 = vadd.xlane.f32.xlu0 %v175
    %v177 = vpop.xlane.xlu0 %176
    %v178 = vsel %vm143, %v168, 0.0
    %179 = vadd.xlane.f32.xlu0 %v178
    %v180 = vpop.xlane.xlu0 %179
    %v181 = vrcp.pop 31.0
    %v182 = vmul.f32 %v171, %v181
    %v183 = vmul.f32 %v174, %v181
    %v184 = vmul.f32 %v177, %v181
    %v185 = vmul.f32 %v180, %v181
    %v186 = vrsqrt.pop %v182
    %v187 = vmul.f32 %v182, %v186
    %vm188 = vcmp.eq.f32.partialorder %v182, inf
    %v189 = vsel %vm188, %v182, %v187
    %vm190 = vcmp.eq.f32.partialorder %v182, 0.0
    %v191 = vand.u32 %v182, 2147483648
    %v192 = vsel %vm190, %v191, %v189
    %v193 = vrsqrt.pop %v183
    %v194 = vmul.f32 %v183, %v193
    %vm195 = vcmp.eq.f32.partialorder %v183, inf
    %v196 = vsel %vm195, %v183, %v194
    %vm197 = vcmp.eq.f32.partialorder %v183, 0.0
    %v198 = vand.u32 %v183, 2147483648
    %v199 = vsel %vm197, %v198, %v196
    %v200 = vrsqrt.pop %v184
    %v201 = vmul.f32 %v184, %v200
    %vm202 = vcmp.eq.f32.partialorder %v184, inf
    %v203 = vsel %vm202, %v184, %v201
    %vm204 = vcmp.eq.f32.partialorder %v184, 0.0
    %v205 = vand.u32 %v184, 2147483648
    %v206 = vsel %vm204, %v205, %v203
    %v207 = vrsqrt.pop %v185
    %v208 = vmul.f32 %v185, %v207
    %vm209 = vcmp.eq.f32.partialorder %v185, inf
    %v210 = vsel %vm209, %v185, %v208
    %vm211 = vcmp.eq.f32.partialorder %v185, 0.0
    %v212 = vand.u32 %v185, 2147483648
    %v213 = vsel %vm211, %v212, %v210
    %v214 = vld [vmem:[#allocation7] sm:$0x1]
    %v216 = vlaneseq
    %v217 = vshrl.u32 %v216, 7
    %v218 = vsub.s32 0, %v217
    %v219 = vrot.slane %v214, %v218
    %v221 = vmul.f32 %v219, %v161
    %v222 = vmul.f32 %v219, %v162
    %v223 = vmul.f32 %v219, %v163
    %v224 = vmul.f32 %v219, %v164
    %v225 = vadd.f32 %v192, 1e-06
    %v226 = vadd.f32 %v199, 1e-06
    %v227 = vadd.f32 %v206, 1e-06
    %v228 = vadd.f32 %v213, 1e-06
    %v229 = vrcp.pop %v225
    %v230 = vmul.f32 %v221, %v229
    %v231 = vrcp.pop %v226
    %v232 = vmul.f32 %v222, %v231
    %v233 = vrcp.pop %v227
    %v234 = vmul.f32 %v223, %v233
    %v235 = vrcp.pop %v228
    %v236 = vmul.f32 %v224, %v235
    %v237 = vld [vmem:[#allocation9] sm:$0x1]
    %v239 = vlaneseq
    %v240 = vshrl.u32 %v239, 7
    %v241 = vsub.s32 0, %v240
    %v242 = vrot.slane %v237, %v241
    %v244 = vadd.f32 %v230, %v242
    %v245 = vadd.f32 %v232, %v242
    %v246 = vadd.f32 %v234, %v242
    %v247 = vadd.f32 %v236, %v242
    %v248 = vld [vmem:[%s1] sm:$0xff]
    %v249 = vld [vmem:[%s1 + $0x8] sm:$0xff]
    %v250 = vld [vmem:[%s1 + $0x10] sm:$0xff]
    %v251 = vld [vmem:[%s1 + $0x18] sm:$0xff]
    %vm252 = vcmp.eq.s32.totalorder %v248, 1
    %vm253 = vcmp.eq.s32.totalorder %v249, 1
    %vm254 = vcmp.eq.s32.totalorder %v250, 1
    %vm255 = vcmp.eq.s32.totalorder %v251, 1
    %s256 = sld [smem:[#allocation6 + $0x1]]
    %v257 = vstv %s256
    %v258 = vsel %vm252, %v257, 0.0
    %v259 = vsel %vm253, %v257, 0.0
    %v260 = vsel %vm254, %v257, 0.0
    %v261 = vsel %vm255, %v257, 0.0
    %vm262 = vcmp.eq.s32.totalorder %v248, 2
    %vm263 = vcmp.eq.s32.totalorder %v249, 2
    %vm264 = vcmp.eq.s32.totalorder %v250, 2
    %vm265 = vcmp.eq.s32.totalorder %v251, 2
    %s266 = sld [smem:[#allocation6 + $0x2]]
    %v267 = vstv %s266
    %v268 = vsel %vm262, %v267, %v258
    %v269 = vsel %vm263, %v267, %v259
    %v270 = vsel %vm264, %v267, %v260
    %v271 = vsel %vm265, %v267, %v261
    %vm272 = vcmp.eq.s32.totalorder %v248, 3
    %vm273 = vcmp.eq.s32.totalorder %v249, 3
    %vm274 = vcmp.eq.s32.totalorder %v250, 3
    %vm275 = vcmp.eq.s32.totalorder %v251, 3
    %s276 = sld [smem:[#allocation6 + $0x3]]
    %v277 = vstv %s276
    %v278 = vsel %vm272, %v277, %v268
    %v279 = vsel %vm273, %v277, %v269
    %v280 = vsel %vm274, %v277, %v270
    %v281 = vsel %vm275, %v277, %v271
    %vm282 = vcmp.eq.s32.totalorder %v248, 4
    %vm283 = vcmp.eq.s32.totalorder %v249, 4
    %vm284 = vcmp.eq.s32.totalorder %v250, 4
    %vm285 = vcmp.eq.s32.totalorder %v251, 4
    %s286 = sld [smem:[#allocation6 + $0x4]]
    %v287 = vstv %s286
    %v288 = vsel %vm282, %v287, %v278
    %v289 = vsel %vm283, %v287, %v279
    %v290 = vsel %vm284, %v287, %v280
    %v291 = vsel %vm285, %v287, %v281
    %vm292 = vcmp.eq.s32.totalorder %v248, 5
    %vm293 = vcmp.eq.s32.totalorder %v249, 5
    %vm294 = vcmp.eq.s32.totalorder %v250, 5
    %vm295 = vcmp.eq.s32.totalorder %v251, 5
    %s296 = sld [smem:[#allocation6 + $0x5]]
    %v297 = vstv %s296
    %v298 = vsel %vm292, %v297, %v288
    %v299 = vsel %vm293, %v297, %v289
    %v300 = vsel %vm294, %v297, %v290
    %v301 = vsel %vm295, %v297, %v291
    %vm302 = vcmp.eq.s32.totalorder %v248, 6
    %vm303 = vcmp.eq.s32.totalorder %v249, 6
    %vm304 = vcmp.eq.s32.totalorder %v250, 6
    %vm305 = vcmp.eq.s32.totalorder %v251, 6
    %s306 = sld [smem:[#allocation6 + $0x6]]
    %v307 = vstv %s306
    %v308 = vsel %vm302, %v307, %v298
    %v309 = vsel %vm303, %v307, %v299
    %v310 = vsel %vm304, %v307, %v300
    %v311 = vsel %vm305, %v307, %v301
    %vm312 = vcmp.eq.s32.totalorder %v248, 7
    %vm313 = vcmp.eq.s32.totalorder %v249, 7
    %vm314 = vcmp.eq.s32.totalorder %v250, 7
    %vm315 = vcmp.eq.s32.totalorder %v251, 7
    %s316 = sld [smem:[#allocation6 + $0x7]]
    %v317 = vstv %s316
    %v318 = vsel %vm312, %v317, %v308
    %v319 = vsel %vm313, %v317, %v309
    %v320 = vsel %vm314, %v317, %v310
    %v321 = vsel %vm315, %v317, %v311
    %v322 = vld [vmem:[#allocation2] sm:$0xff]
    %v323 = vld [vmem:[#allocation2 + $0x8] sm:$0xff]
    %v324 = vld [vmem:[#allocation2 + $0x10] sm:$0xff]
    %v325 = vld [vmem:[#allocation2 + $0x18] sm:$0xff]
    %v326 = vmul.f32 %v322, 0.25
    %v327 = vmul.f32 %v323, 0.25
    %v328 = vmul.f32 %v324, 0.25
    %v329 = vmul.f32 %v325, 0.25
    %v330 = vmul.f32 %v326, %v326
    %v331 = vmul.f32 %v327, %v327
    %v332 = vmul.f32 %v328, %v328
    %v333 = vmul.f32 %v329, %v329
    %v334 = vmul.f32 %v330, %v326
    %v335 = vmul.f32 %v331, %v327
    %v336 = vmul.f32 %v332, %v328
    %v337 = vmul.f32 %v333, %v329
    %v338 = vmul.f32 %v334, %v326
    %v339 = vmul.f32 %v335, %v327
    %v340 = vmul.f32 %v336, %v328
    %v341 = vmul.f32 %v337, %v329
    %v342 = vsub.f32 1.0, %v338
    %v343 = vsub.f32 1.0, %v339
    %v344 = vsub.f32 1.0, %v340
    %v345 = vsub.f32 1.0, %v341
    %v346 = vmul.f32 %v322, -1.0
    %v347 = vmul.f32 %v323, -1.0
    %v348 = vmul.f32 %v324, -1.0
    %v349 = vmul.f32 %v325, -1.0
    %v350 = vmul.f32 %v346, 1.442695
    %v351 = vpow.pop %v350
    %v352 = vmul.f32 %v347, 1.442695
    %v353 = vpow.pop %v352
    %v354 = vmul.f32 %v348, 1.442695
    %v355 = vpow.pop %v354
    %v356 = vmul.f32 %v349, 1.442695
    %v357 = vpow.pop %v356
    %v358 = vmul.f32 %v342, %v351
    %v359 = vmul.f32 %v343, %v353
    %v360 = vmul.f32 %v344, %v355
    %v361 = vmul.f32 %v345, %v357
    %v362 = vadd.f32 %v318, %v358
    %v363 = vadd.f32 %v319, %v359
    %v364 = vadd.f32 %v320, %v360
    %v365 = vadd.f32 %v321, %v361
    %v366 = vpack.c.bf16 %v363, %v362
    %v367 = vpack.c.bf16 %v365, %v364
    %v368 = vpack.c.bf16 %v245, %v244
    %v369 = vpack.c.bf16 %v247, %v246
    %vm370 = vcmask 130048
    %v372 = vsel %vm370, %v366, 0
    %374 = vmatprep.subr.bf16.mxu0 0
    %375 = vmatpush1.bf16.msra.mxu0 %v368
    %376 = vmatprep.subr.bf16.mxu0 0
    %377 = vmatpush1.bf16.msra.mxu0 0
    %378 = vmatprep.subr.bf16.mxu0 0
    %379 = vmatpush1.bf16.msra.mxu0 0
    %380 = vmatprep.subr.bf16.mxu0 0
    %381 = vmatpush1.bf16.msra.mxu0 0
    %382 = vmatprep.subr.bf16.mxu0 0
    %383 = vmatpush1.bf16.msra.mxu0 0
    %384 = vmatprep.subr.bf16.mxu0 0
    %385 = vmatpush1.bf16.msra.mxu0 0
    %386 = vmatprep.subr.bf16.mxu0 0
    %387 = vmatpush1.bf16.msra.mxu0 0
    %388 = vmatprep.subr.bf16.mxu0 0
    %389 = vmatpush1.bf16.msra.mxu0 0
    %390 = vmatprep.subr.bf16.mxu0 0
    %391 = vmatpush1.bf16.msra.mxu0 0
    %392 = vmatprep.subr.bf16.mxu0 0
    %393 = vmatpush1.bf16.msra.mxu0 0
    %394 = vmatprep.subr.bf16.mxu0 0
    %395 = vmatpush1.bf16.msra.mxu0 0
    %396 = vmatprep.subr.bf16.mxu0 0
    %397 = vmatpush1.bf16.msra.mxu0 0
    %398 = vmatprep.subr.bf16.mxu0 0
    %399 = vmatpush1.bf16.msra.mxu0 0
    %400 = vmatprep.subr.bf16.mxu0 0
    %401 = vmatpush1.bf16.msra.mxu0 0
    %402 = vmatprep.subr.bf16.mxu0 0
    %403 = vmatpush1.bf16.msra.mxu0 0
    %404 = vmatprep.subr.bf16.mxu0 0
    %405 = vmatpush1.bf16.msra.mxu0 0
    %406 = vmatprep.mubr.bf16.mxu0 0
    %407 = vmatmul.mubr.bf16.gmra.mrb[0].mxu0 %v372
    %v408 = vpop.f32.mrb[0].mxu0
    %v409 = vadd.f32 0.0, %v408
    %v410 = vpop.f32.mrb[0].mxu0
    %v411 = vpop.f32.mrb[0].mxu0
    %v412 = vadd.f32 0.0, %v411
    %v413 = vpop.f32.mrb[0].mxu0
    %414 = vdwg.mxu0
    %v416 = vsel %vm370, %v367, 0
    %418 = vmatprep.subr.bf16.mxu0 0
    %419 = vmatpush1.bf16.msra.mxu0 %v369
    %420 = vmatprep.subr.bf16.mxu0 0
    %421 = vmatpush1.bf16.msra.mxu0 0
    %422 = vmatprep.subr.bf16.mxu0 0
    %423 = vmatpush1.bf16.msra.mxu0 0
    %424 = vmatprep.subr.bf16.mxu0 0
    %425 = vmatpush1.bf16.msra.mxu0 0
    %426 = vmatprep.subr.bf16.mxu0 0
    %427 = vmatpush1.bf16.msra.mxu0 0
    %428 = vmatprep.subr.bf16.mxu0 0
    %429 = vmatpush1.bf16.msra.mxu0 0
    %430 = vmatprep.subr.bf16.mxu0 0
    %431 = vmatpush1.bf16.msra.mxu0 0
    %432 = vmatprep.subr.bf16.mxu0 0
    %433 = vmatpush1.bf16.msra.mxu0 0
    %434 = vmatprep.subr.bf16.mxu0 0
    %435 = vmatpush1.bf16.msra.mxu0 0
    %436 = vmatprep.subr.bf16.mxu0 0
    %437 = vmatpush1.bf16.msra.mxu0 0
    %438 = vmatprep.subr.bf16.mxu0 0
    %439 = vmatpush1.bf16.msra.mxu0 0
    %440 = vmatprep.subr.bf16.mxu0 0
    %441 = vmatpush1.bf16.msra.mxu0 0
    %442 = vmatprep.subr.bf16.mxu0 0
    %443 = vmatpush1.bf16.msra.mxu0 0
    %444 = vmatprep.subr.bf16.mxu0 0
    %445 = vmatpush1.bf16.msra.mxu0 0
    %446 = vmatprep.subr.bf16.mxu0 0
    %447 = vmatpush1.bf16.msra.mxu0 0
    %448 = vmatprep.subr.bf16.mxu0 0
    %449 = vmatpush1.bf16.msra.mxu0 0
    %450 = vmatprep.mubr.bf16.mxu0 0
    %451 = vmatmul.mubr.bf16.gmra.mrb[0].mxu0 %v416
    %v452 = vpop.f32.mrb[0].mxu0
    %v453 = vadd.f32 0.0, %v452
    %v454 = vpop.f32.mrb[0].mxu0
    %v455 = vpop.f32.mrb[0].mxu0
    %v456 = vadd.f32 0.0, %v455
    %v457 = vpop.f32.mrb[0].mxu0
    %458 = vdwg.mxu0
    %v459 = vpack.c.bf16 %v412, %v409
    %v460 = vpack.c.bf16 %v456, %v453
    %v461 = vld [vmem:[%s7] sm:$0xff]
    %v462 = vld [vmem:[%s7 + $0x8] sm:$0xff]
    %v463 = vld [vmem:[%s7 + $0x10] sm:$0xff]
    %v464 = vld [vmem:[%s7 + $0x18] sm:$0xff]
    %v465 = vpack.c.bf16 %v462, %v461
    %v466 = vpack.c.bf16 %v464, %v463
    %v467 = vld [vmem:[#allocation10] sm:$0x1]
    %v469 = vlaneseq
    %v470 = vshrl.u32 %v469, 7
    %v471 = vsub.s32 0, %v470
    %v472 = vrot.slane %v467, %v471
    %v475 = vsel %vm143, %v459, 0
    %v478 = vsel %vm143, %v460, 0
    %480 = vmatprep.subr.bf16.mxu0 0
    %481 = vmatpush1.bf16.msra.mxu0 %v465
    %482 = vmatprep.subr.bf16.mxu0 0
    %483 = vmatpush1.bf16.msra.mxu0 %v466
    %484 = vmatprep.subr.bf16.mxu0 0
    %485 = vmatpush1.bf16.msra.mxu0 0
    %486 = vmatprep.subr.bf16.mxu0 0
    %487 = vmatpush1.bf16.msra.mxu0 0
    %488 = vmatprep.subr.bf16.mxu0 0
    %489 = vmatpush1.bf16.msra.mxu0 0
    %490 = vmatprep.subr.bf16.mxu0 0
    %491 = vmatpush1.bf16.msra.mxu0 0
    %492 = vmatprep.subr.bf16.mxu0 0
    %493 = vmatpush1.bf16.msra.mxu0 0
    %494 = vmatprep.subr.bf16.mxu0 0
    %495 = vmatpush1.bf16.msra.mxu0 0
    %496 = vmatprep.subr.bf16.mxu0 0
    %497 = vmatpush1.bf16.msra.mxu0 0
    %498 = vmatprep.subr.bf16.mxu0 0
    %499 = vmatpush1.bf16.msra.mxu0 0
    %500 = vmatprep.subr.bf16.mxu0 0
    %501 = vmatpush1.bf16.msra.mxu0 0
    %502 = vmatprep.subr.bf16.mxu0 0
    %503 = vmatpush1.bf16.msra.mxu0 0
    %504 = vmatprep.subr.bf16.mxu0 0
    %505 = vmatpush1.bf16.msra.mxu0 0
    %506 = vmatprep.subr.bf16.mxu0 0
    %507 = vmatpush1.bf16.msra.mxu0 0
    %508 = vmatprep.subr.bf16.mxu0 0
    %509 = vmatpush1.bf16.msra.mxu0 0
    %510 = vmatprep.subr.bf16.mxu0 0
    %511 = vmatpush1.bf16.msra.mxu0 0
    %512 = vmatprep.mubr.bf16.mxu0 0
    %513 = vmatmul.mubr.bf16.gmra.mrb[0].mxu0 %v475
    %v514 = vpop.f32.mrb[0].mxu0
    %v515 = vadd.f32 %v472, %v514
    %v516 = vpop.f32.mrb[0].mxu0
    %v517 = vpop.f32.mrb[0].mxu0
    %v518 = vadd.f32 %v472, %v517
    %v519 = vpop.f32.mrb[0].mxu0
    %520 = vmatprep.mubr.bf16.mxu0 0
    %521 = vmatmul.mubr.bf16.gmra.mrb[0].mxu0 %v478
    %v522 = vpop.f32.mrb[0].mxu0
    %v523 = vadd.f32 %v472, %v522
    %v524 = vpop.f32.mrb[0].mxu0
    %v525 = vpop.f32.mrb[0].mxu0
    %v526 = vadd.f32 %v472, %v525
    %v527 = vpop.f32.mrb[0].mxu0
    %528 = vdwg.mxu0
    %v529 = vmax.f32 %v515, 0.0
    %v530 = vmax.f32 %v518, 0.0
    %v531 = vmax.f32 %v523, 0.0
    %v532 = vmax.f32 %v526, 0.0
    %v533 = vpack.c.bf16 %v530, %v529
    %v534 = vpack.c.bf16 %v532, %v531
    %535 = vmatprep.subr.bf16.mxu0 0
    %536 = vmatpush1.bf16.msra.mxu0 %v533
    %537 = vmatprep.subr.bf16.mxu0 0
    %538 = vmatpush1.bf16.msra.mxu0 0
    %539 = vmatprep.subr.bf16.mxu0 0
    %540 = vmatpush1.bf16.msra.mxu0 0
    %541 = vmatprep.subr.bf16.mxu0 0
    %542 = vmatpush1.bf16.msra.mxu0 0
    %543 = vmatprep.subr.bf16.mxu0 0
    %544 = vmatpush1.bf16.msra.mxu0 0
    %545 = vmatprep.subr.bf16.mxu0 0
    %546 = vmatpush1.bf16.msra.mxu0 0
    %547 = vmatprep.subr.bf16.mxu0 0
    %548 = vmatpush1.bf16.msra.mxu0 0
    %549 = vmatprep.subr.bf16.mxu0 0
    %550 = vmatpush1.bf16.msra.mxu0 0
    %551 = vmatprep.subr.bf16.mxu0 0
    %552 = vmatpush1.bf16.msra.mxu0 0
    %553 = vmatprep.subr.bf16.mxu0 0
    %554 = vmatpush1.bf16.msra.mxu0 0
    %555 = vmatprep.subr.bf16.mxu0 0
    %556 = vmatpush1.bf16.msra.mxu0 0
    %557 = vmatprep.subr.bf16.mxu0 0
    %558 = vmatpush1.bf16.msra.mxu0 0
    %559 = vmatprep.subr.bf16.mxu0 0
    %560 = vmatpush1.bf16.msra.mxu0 0
    %561 = vmatprep.subr.bf16.mxu0 0
    %562 = vmatpush1.bf16.msra.mxu0 0
    %563 = vmatprep.subr.bf16.mxu0 0
    %564 = vmatpush1.bf16.msra.mxu0 0
    %565 = vmatprep.subr.bf16.mxu0 0
    %566 = vmatpush1.bf16.msra.mxu0 0
    %567 = vmatprep.mubr.bf16.mxu0 0
    %568 = vmatmul.mubr.bf16.gmra.mrb[0].mxu0 %v372
    %v569 = vpop.f32.mrb[0].mxu0
    %v570 = vadd.f32 0.0, %v569
    %v571 = vpop.f32.mrb[0].mxu0
    %v572 = vpop.f32.mrb[0].mxu0
    %v573 = vadd.f32 0.0, %v572
    %v574 = vpop.f32.mrb[0].mxu0
    %575 = vdwg.mxu0
    %576 = vmatprep.subr.bf16.mxu0 0
    %577 = vmatpush1.bf16.msra.mxu0 %v534
    %578 = vmatprep.subr.bf16.mxu0 0
    %579 = vmatpush1.bf16.msra.mxu0 0
    %580 = vmatprep.subr.bf16.mxu0 0
    %581 = vmatpush1.bf16.msra.mxu0 0
    %582 = vmatprep.subr.bf16.mxu0 0
    %583 = vmatpush1.bf16.msra.mxu0 0
    %584 = vmatprep.subr.bf16.mxu0 0
    %585 = vmatpush1.bf16.msra.mxu0 0
    %586 = vmatprep.subr.bf16.mxu0 0
    %587 = vmatpush1.bf16.msra.mxu0 0
    %588 = vmatprep.subr.bf16.mxu0 0
    %589 = vmatpush1.bf16.msra.mxu0 0
    %590 = vmatprep.subr.bf16.mxu0 0
    %591 = vmatpush1.bf16.msra.mxu0 0
    %592 = vmatprep.subr.bf16.mxu0 0
    %593 = vmatpush1.bf16.msra.mxu0 0
    %594 = vmatprep.subr.bf16.mxu0 0
    %595 = vmatpush1.bf16.msra.mxu0 0
    %596 = vmatprep.subr.bf16.mxu0 0
    %597 = vmatpush1.bf16.msra.mxu0 0
    %598 = vmatprep.subr.bf16.mxu0 0
    %599 = vmatpush1.bf16.msra.mxu0 0
    %600 = vmatprep.subr.bf16.mxu0 0
    %601 = vmatpush1.bf16.msra.mxu0 0
    %602 = vmatprep.subr.bf16.mxu0 0
    %603 = vmatpush1.bf16.msra.mxu0 0
    %604 = vmatprep.subr.bf16.mxu0 0
    %605 = vmatpush1.bf16.msra.mxu0 0
    %606 = vmatprep.subr.bf16.mxu0 0
    %607 = vmatpush1.bf16.msra.mxu0 0
    %608 = vmatprep.mubr.bf16.mxu0 0
    %609 = vmatmul.mubr.bf16.gmra.mrb[0].mxu0 %v416
    %v610 = vpop.f32.mrb[0].mxu0
    %v611 = vadd.f32 0.0, %v610
    %v612 = vpop.f32.mrb[0].mxu0
    %v613 = vpop.f32.mrb[0].mxu0
    %v614 = vadd.f32 0.0, %v613
    %v615 = vpop.f32.mrb[0].mxu0
    %616 = vdwg.mxu0
    %v617 = vpack.c.bf16 %v573, %v570
    %v618 = vpack.c.bf16 %v614, %v611
    %v619 = vld [vmem:[#allocation12] sm:$0xff]
    %v620 = vld [vmem:[#allocation12 + $0x8] sm:$0xff]
    %v621 = vld [vmem:[#allocation12 + $0x10] sm:$0xff]
    %v622 = vld [vmem:[#allocation12 + $0x18] sm:$0xff]
    %v623 = vpack.c.bf16 %v620, %v619
    %v624 = vpack.c.bf16 %v622, %v621
    %v625 = vld [vmem:[%s10] sm:$0x1]
    %v627 = vlaneseq
    %v628 = vshrl.u32 %v627, 7
    %v629 = vsub.s32 0, %v628
    %v630 = vrot.slane %v625, %v629
    %v633 = vsel %vm143, %v617, 0
    %v636 = vsel %vm143, %v618, 0
    %638 = vmatprep.subr.bf16.mxu0 0
    %639 = vmatpush1.bf16.msra.mxu0 %v623
    %640 = vmatprep.subr.bf16.mxu0 0
    %641 = vmatpush1.bf16.msra.mxu0 %v624
    %642 = vmatprep.subr.bf16.mxu0 0
    %643 = vmatpush1.bf16.msra.mxu0 0
    %644 = vmatprep.subr.bf16.mxu0 0
    %645 = vmatpush1.bf16.msra.mxu0 0
    %646 = vmatprep.subr.bf16.mxu0 0
    %647 = vmatpush1.bf16.msra.mxu0 0
    %648 = vmatprep.subr.bf16.mxu0 0
    %649 = vmatpush1.bf16.msra.mxu0 0
    %650 = vmatprep.subr.bf16.mxu0 0
    %651 = vmatpush1.bf16.msra.mxu0 0
    %652 = vmatprep.subr.bf16.mxu0 0
    %653 = vmatpush1.bf16.msra.mxu0 0
    %654 = vmatprep.subr.bf16.mxu0 0
    %655 = vmatpush1.bf16.msra.mxu0 0
    %656 = vmatprep.subr.bf16.mxu0 0
    %657 = vmatpush1.bf16.msra.mxu0 0
    %658 = vmatprep.subr.bf16.mxu0 0
    %659 = vmatpush1.bf16.msra.mxu0 0
    %660 = vmatprep.subr.bf16.mxu0 0
    %661 = vmatpush1.bf16.msra.mxu0 0
    %662 = vmatprep.subr.bf16.mxu0 0
    %663 = vmatpush1.bf16.msra.mxu0 0
    %664 = vmatprep.subr.bf16.mxu0 0
    %665 = vmatpush1.bf16.msra.mxu0 0
    %666 = vmatprep.subr.bf16.mxu0 0
    %667 = vmatpush1.bf16.msra.mxu0 0
    %668 = vmatprep.subr.bf16.mxu0 0
    %669 = vmatpush1.bf16.msra.mxu0 0
    %670 = vmatprep.mubr.bf16.mxu0 0
    %671 = vmatmul.mubr.bf16.gmra.mrb[0].mxu0 %v633
    %v672 = vpop.f32.mrb[0].mxu0
    %v673 = vadd.f32 %v630, %v672
    %v674 = vpop.f32.mrb[0].mxu0
    %v675 = vpop.f32.mrb[0].mxu0
    %v676 = vadd.f32 %v630, %v675
    %v677 = vpop.f32.mrb[0].mxu0
    %678 = vmatprep.mubr.bf16.mxu0 0
    %679 = vmatmul.mubr.bf16.gmra.mrb[0].mxu0 %v636
    %v680 = vpop.f32.mrb[0].mxu0
    %v681 = vadd.f32 %v630, %v680
    %v682 = vpop.f32.mrb[0].mxu0
    %v683 = vpop.f32.mrb[0].mxu0
    %v684 = vadd.f32 %v630, %v683
    %v685 = vpop.f32.mrb[0].mxu0
    %686 = vdwg.mxu0
    %v687 = vmax.f32 %v673, 0.0
    %v688 = vmax.f32 %v676, 0.0
    %v689 = vmax.f32 %v681, 0.0
    %v690 = vmax.f32 %v684, 0.0
    %v691 = vpack.c.bf16 %v688, %v687
    %v692 = vpack.c.bf16 %v690, %v689
    %v693 = vld [vmem:[#allocation13] sm:$0xff]
    %v694 = vld [vmem:[#allocation13 + $0x8] sm:$0xff]
    %v695 = vld [vmem:[#allocation13 + $0x10] sm:$0xff]
    %v696 = vld [vmem:[#allocation13 + $0x18] sm:$0xff]
    %v697 = vpack.c.bf16 %v694, %v693
    %v698 = vpack.c.bf16 %v696, %v695
    %v699 = vld [vmem:[%s12] sm:$0x1]
    %v701 = vlaneseq
    %v702 = vshrl.u32 %v701, 7
    %v703 = vsub.s32 0, %v702
    %v704 = vrot.slane %v699, %v703
    %v707 = vsel %vm143, %v691, 0
    %v710 = vsel %vm143, %v692, 0
    %712 = vmatprep.subr.bf16.mxu0 0
    %713 = vmatpush1.bf16.msra.mxu0 %v697
    %714 = vmatprep.subr.bf16.mxu0 0
    %715 = vmatpush1.bf16.msra.mxu0 %v698
    %716 = vmatprep.subr.bf16.mxu0 0
    %717 = vmatpush1.bf16.msra.mxu0 0
    %718 = vmatprep.subr.bf16.mxu0 0
    %719 = vmatpush1.bf16.msra.mxu0 0
    %720 = vmatprep.subr.bf16.mxu0 0
    %721 = vmatpush1.bf16.msra.mxu0 0
    %722 = vmatprep.subr.bf16.mxu0 0
    %723 = vmatpush1.bf16.msra.mxu0 0
    %724 = vmatprep.subr.bf16.mxu0 0
    %725 = vmatpush1.bf16.msra.mxu0 0
    %726 = vmatprep.subr.bf16.mxu0 0
    %727 = vmatpush1.bf16.msra.mxu0 0
    %728 = vmatprep.subr.bf16.mxu0 0
    %729 = vmatpush1.bf16.msra.mxu0 0
    %730 = vmatprep.subr.bf16.mxu0 0
    %731 = vmatpush1.bf16.msra.mxu0 0
    %732 = vmatprep.subr.bf16.mxu0 0
    %733 = vmatpush1.bf16.msra.mxu0 0
    %734 = vmatprep.subr.bf16.mxu0 0
    %735 = vmatpush1.bf16.msra.mxu0 0
    %736 = vmatprep.subr.bf16.mxu0 0
    %737 = vmatpush1.bf16.msra.mxu0 0
    %738 = vmatprep.subr.bf16.mxu0 0
    %739 = vmatpush1.bf16.msra.mxu0 0
    %740 = vmatprep.subr.bf16.mxu0 0
    %741 = vmatpush1.bf16.msra.mxu0 0
    %742 = vmatprep.subr.bf16.mxu0 0
    %743 = vmatpush1.bf16.msra.mxu0 0
    %744 = vmatprep.mubr.bf16.mxu0 0
    %745 = vmatmul.mubr.bf16.gmra.mrb[0].mxu0 %v707
    %v746 = vpop.f32.mrb[0].mxu0
    %v747 = vadd.f32 %v704, %v746
    %v748 = vpop.f32.mrb[0].mxu0
    %v749 = vpop.f32.mrb[0].mxu0
    %v750 = vadd.f32 %v704, %v749
    %v751 = vpop.f32.mrb[0].mxu0
    %752 = vmatprep.mubr.bf16.mxu0 0
    %753 = vmatmul.mubr.bf16.gmra.mrb[0].mxu0 %v710
    %v754 = vpop.f32.mrb[0].mxu0
    %v755 = vadd.f32 %v704, %v754
    %v756 = vpop.f32.mrb[0].mxu0
    %v757 = vpop.f32.mrb[0].mxu0
    %v758 = vadd.f32 %v704, %v757
    %v759 = vpop.f32.mrb[0].mxu0
    %760 = vdwg.mxu0
    %v761 = vmax.f32 %v747, 0.0
    %v762 = vmax.f32 %v750, 0.0
    %v763 = vmax.f32 %v755, 0.0
    %v764 = vmax.f32 %v758, 0.0
    %v765 = vld [vmem:[%s3] sm:$0xff]
    %v766 = vld [vmem:[%s3 + $0x8] sm:$0xff]
    %v767 = vld [vmem:[%s3 + $0x10] sm:$0xff]
    %v768 = vld [vmem:[%s3 + $0x18] sm:$0xff]
    %vm769 = vcmask 7168
    %v770 = vsel %vm769, %v765, 0.0
    %v771 = vsel %vm769, %v766, 0.0
    %v772 = vadd.f32 %v770, %v771
    %v773 = vrot.slane %v772, 4
    %v774 = vadd.f32 %v772, %v773
    %v775 = vrot.slane %v774, 2
    %v776 = vadd.f32 %v774, %v775
    %v777 = vrot.slane %v776, 1
    %v778 = vadd.f32 %v776, %v777
    %v779 = vsel %vm769, %v767, 0.0
    %v780 = vsel %vm769, %v768, 0.0
    %v781 = vadd.f32 %v779, %v780
    %v782 = vrot.slane %v781, 4
    %v783 = vadd.f32 %v781, %v782
    %v784 = vrot.slane %v783, 2
    %v785 = vadd.f32 %v783, %v784
    %v786 = vrot.slane %v785, 1
    %v787 = vadd.f32 %v785, %v786
    %789 = vset.pattern.permute.xlu0 0
    %790 = vperm.xlu0 %789, %v765
    %v791 = vpop.permute.xlu0 %790
    %794 = vset.pattern.permute.xlu0 0
    %795 = vperm.xlu0 %794, %v766
    %v796 = vpop.permute.xlu0 %795
    %799 = vset.pattern.permute.xlu0 0
    %800 = vperm.xlu0 %799, %v767
    %v801 = vpop.permute.xlu0 %800
    %804 = vset.pattern.permute.xlu0 0
    %805 = vperm.xlu0 %804, %v768
    %v806 = vpop.permute.xlu0 %805
    %v808 = vmul.f32 %v761, %v791
    %v809 = vmul.f32 %v762, %v796
    %v810 = vmul.f32 %v763, %v801
    %v811 = vmul.f32 %v764, %v806
    %v812 = vsel %vm143, %v808, 0.0
    %v813 = vsel %vm143, %v809, 0.0
    %v814 = vadd.f32 %v812, %v813
    %v815 = vrot.slane %v814, 4
    %v816 = vadd.f32 %v814, %v815
    %v817 = vrot.slane %v816, 2
    %v818 = vadd.f32 %v816, %v817
    %v819 = vrot.slane %v818, 1
    %v820 = vadd.f32 %v818, %v819
    %v821 = vsel %vm143, %v810, 0.0
    %v822 = vsel %vm143, %v811, 0.0
    %v823 = vadd.f32 %v821, %v822
    %v824 = vrot.slane %v823, 4
    %v825 = vadd.f32 %v823, %v824
    %v826 = vrot.slane %v825, 2
    %v827 = vadd.f32 %v825, %v826
    %v828 = vrot.slane %v827, 1
    %v829 = vadd.f32 %v827, %v828
    %831 = vset.pattern.permute.xlu0 0
    %832 = vperm.xlu0 %831, %v778
    %v833 = vpop.permute.xlu0 %832
    %836 = vset.pattern.permute.xlu0 0
    %837 = vperm.xlu0 %836, %v787
    %v838 = vpop.permute.xlu0 %837
    %v840 = vrcp.pop %v833
    %v841 = vmul.f32 %v820, %v840
    %v842 = vrcp.pop %v838
    %v843 = vmul.f32 %v829, %v842
    %v844 = vld [vmem:[%s13] sm:$0xff]
    %v845 = vld [vmem:[%s13 + $0x8] sm:$0xff]
    %v846 = vld [vmem:[%s13 + $0x10] sm:$0xff]
    %v847 = vld [vmem:[%s13 + $0x18] sm:$0xff]
    %v848 = vld [vmem:[%s14] sm:$0x1]
    %v850 = vlaneseq
    %v851 = vshrl.u32 %v850, 7
    %v852 = vsub.s32 0, %v851
    %v853 = vrot.slane %v848, %v852
    %vm857 = vcmask 1041409
    %v858 = vsel %vm857, %v843, %v841
    %v859 = vsel %vm143, %v858, 0
    %861 = vmatprep.subr.mxu0 0.0
    %862 = vmatpush1.msra.mxu0 %v844
    %863 = vmatprep.subr.mxu0 0.0
    %864 = vmatpush1.msra.mxu0 %v845
    %865 = vmatprep.subr.mxu0 0.0
    %866 = vmatpush1.msra.mxu0 %v846
    %867 = vmatprep.subr.mxu0 0.0
    %868 = vmatpush1.msra.mxu0 %v847
    %869 = vmatprep.subr.mxu0 0.0
    %870 = vmatpush1.msra.mxu0 0.0
    %871 = vmatprep.subr.mxu0 0.0
    %872 = vmatpush1.msra.mxu0 0.0
    %873 = vmatprep.subr.mxu0 0.0
    %874 = vmatpush1.msra.mxu0 0.0
    %875 = vmatprep.subr.mxu0 0.0
    %876 = vmatpush1.msra.mxu0 0.0
    %877 = vmatprep.subr.mxu0 0.0
    %878 = vmatpush1.msra.mxu0 0.0
    %879 = vmatprep.subr.mxu0 0.0
    %880 = vmatpush1.msra.mxu0 0.0
    %881 = vmatprep.subr.mxu0 0.0
    %882 = vmatpush1.msra.mxu0 0.0
    %883 = vmatprep.subr.mxu0 0.0
    %884 = vmatpush1.msra.mxu0 0.0
    %885 = vmatprep.subr.mxu0 0.0
    %886 = vmatpush1.msra.mxu0 0.0
    %887 = vmatprep.subr.mxu0 0.0
    %888 = vmatpush1.msra.mxu0 0.0
    %889 = vmatprep.subr.mxu0 0.0
    %890 = vmatpush1.msra.mxu0 0.0
    %891 = vmatprep.subr.mxu0 0.0
    %892 = vmatpush1.msra.mxu0 0.0
    %893 = vmatprep.subr.mxu0 0.0
    %894 = vmatpush1.msra.mxu0 0.0
    %895 = vmatprep.subr.mxu0 0.0
    %896 = vmatpush1.msra.mxu0 0.0
    %897 = vmatprep.subr.mxu0 0.0
    %898 = vmatpush1.msra.mxu0 0.0
    %899 = vmatprep.subr.mxu0 0.0
    %900 = vmatpush1.msra.mxu0 0.0
    %901 = vmatprep.subr.mxu0 0.0
    %902 = vmatpush1.msra.mxu0 0.0
    %903 = vmatprep.subr.mxu0 0.0
    %904 = vmatpush1.msra.mxu0 0.0
    %905 = vmatprep.subr.mxu0 0.0
    %906 = vmatpush1.msra.mxu0 0.0
    %907 = vmatprep.subr.mxu0 0.0
    %908 = vmatpush1.msra.mxu0 0.0
    %909 = vmatprep.subr.mxu0 0.0
    %910 = vmatpush1.msra.mxu0 0.0
    %911 = vmatprep.subr.mxu0 0.0
    %912 = vmatpush1.msra.mxu0 0.0
    %913 = vmatprep.subr.mxu0 0.0
    %914 = vmatpush1.msra.mxu0 0.0
    %915 = vmatprep.subr.mxu0 0.0
    %916 = vmatpush1.msra.mxu0 0.0
    %917 = vmatprep.subr.mxu0 0.0
    %918 = vmatpush1.msra.mxu0 0.0
    %919 = vmatprep.subr.mxu0 0.0
    %920 = vmatpush1.msra.mxu0 0.0
    %921 = vmatprep.subr.mxu0 0.0
    %922 = vmatpush1.msra.mxu0 0.0
    %923 = vmatprep.subr.mxu0 0.0
    %924 = vmatpush1.msra.mxu0 0.0
    %925 = vmatprep.mubr.f32.mxu0 0.0
    %926 = vmatmul.mubr.f32.gmra.mrb[0].mxu0 %v859
    %v927 = vpop.f32.mrb[0].mxu0
    %v928 = vadd.f32 %v853, %v927
    %v929 = vpop.f32.mrb[0].mxu0
    %930 = vdwg.mxu0
    %vm931 = vcmask 17408
    %932 = vst.msk [vmem:[#allocation15] sm:$0x3] %vm931, %v928
    // Predicated region
    $region90: #{tpu_custom_call.1} parent=1 // pred_check
      _
    $region91: #{tpu_custom_call.1} parent=1 // pred_check_branch
      %934 = sbr.rel (0) target = $region93
    $region92: #{tpu_custom_call.1} parent=1 // pred_region
      %s936 = ssub.s32 32, 32
      %937 = vsyncadd [#allocation4], %s936
      %s939 = sshll.u32 [#allocation15], 4
      %s940 = int_to_ptr.vmem [resolvable:$true] %s939
      %942 = dma.vmem_to_hbm [thread:$0]  %s940, 32, %s15, [#allocation4]
    $region93: #{tpu_custom_call.1} parent=1 // pred_fallthru
      _
    // Predicated region
    $region94: #{tpu_custom_call.1} parent=1 // pred_check
      _
    $region95: #{tpu_custom_call.1} parent=1 // pred_check_branch
      %944 = sbr.rel (0) target = $region97
    $region96: #{tpu_custom_call.1} parent=1 // pred_region
      %945 = dma.done [#allocation4], 32
    $region97: #{tpu_custom_call.1} parent=1 // pred_fallthru
      _
    %946 = vsyncpa [#allocation3], 1
    %947 = vsyncpa [#allocation8], 1
    %948 = vsyncpa [#allocation11], 1
    %949 = vsyncpa [#allocation14], 1
    %950 = vsyncpa [#allocation4], 1
    %951 = vsyncpa [#allocation5], 1

</llo_original>
